<compile_context>
chip_gen: v7x
topology: tpu7x:2x2x1
jax: 0.10.0
libtpu: 0.0.40
codegen_flags: <defaults>
</compile_context>

<pallas_src>
import math

import jax
import jax.numpy as jnp
from jax.experimental import pallas as pl
from jax.experimental.pallas import tpu as pltpu


def _bias_add_kernel(x_ref, b_ref, o_ref):
    # x_ref: (tr, tl) VMEM tile; b_ref: (1, tl) bias tile (broadcast over rows
    # on the VPU); o_ref: (tr, tl) output tile.
    o_ref[...] = x_ref[...] + b_ref[...]


def _largest_divisor_tile(n: int, target: int, multiple: int):
    """Largest t <= target with n % t == 0 and t % multiple == 0.

    Returns n when n <= target (a full-extent block is always legal), and None
    when no aligned divisor exists (caller falls back to a ragged grid).
    """
    if n <= target:
        return n
    t = (min(target, n) // multiple) * multiple
    while t >= multiple:
        if n % t == 0:
            return t
        t -= multiple
    return None


def _round_up(x: int, m: int) -> int:
    return ((x + m - 1) // m) * m


def _block_budget_bytes() -> int:
    """Per-array x-block budget, tuned per TPU generation."""
    kind = ""
    try:
        kind = jax.devices()[0].device_kind.lower()
    except Exception:
        pass
    if "v5 lite" in kind or "v5lite" in kind or "v5e" in kind:
        return 2 << 20   # v5e: keep modest (16 MiB scoped default, 1 vst slot)
    if "v7" in kind:
        return 8 << 20   # v7x: 3.2 TB/s HBM -> amortize per-step overhead harder
    if "v6" in kind or "trillium" in kind:
        return 4 << 20   # v6e: fits default 32 MiB scoped VMEM double-buffered
    return 4 << 20       # unknown: safe with the explicit vmem_limit_bytes below


def bias_layer(x: jax.Array, bias: jax.Array, *, min_bytes_for_pallas: int = 1 << 20) -> jax.Array:
    """Computes x + bias where bias broadcasts along the last dim of x."""
    length = x.shape[-1]
    assert bias.shape == (length,), "bias length must match trailing dim of x"
    bias = bias.astype(x.dtype)  # add happens in x's dtype (same-dtype PyTorch module)
    if x.size == 0:
        return x

    itemsize = jnp.dtype(x.dtype).itemsize
    if x.size * itemsize < min_bytes_for_pallas:
        # Fast path: pallas_call launch/pipeline overhead dominates tiny inputs.
        return x + bias

    orig_shape = x.shape
    rows = x.size // length

    # ---- lane-dense folding -------------------------------------------------
    # Fold rows into the lane axis so the last dim is a multiple of 128:
    # width = lcm(length, 128), bias tiled (width // length) times. Pure
    # row-major metadata reshape of x -> no extra HBM traffic.
    lane_w = (length * 128) // math.gcd(length, 128)
    rep = lane_w // length
    if rep > 1 and rows % rep == 0 and lane_w <= 32768:
        width = lane_w
        rows2 = rows // rep
        bias_row = jnp.tile(bias, rep).reshape(1, width)
    else:
        # TODO(synk): when rows % rep != 0, process a small remainder tail
        # separately instead of falling back to sub-128-lane (masked) stores.
        width = length
        rows2 = rows
        bias_row = bias.reshape(1, width)

    x2d = x.reshape(rows2, width)

    sub_mult = {4: 8, 2: 16, 1: 32}.get(itemsize, 8)   # dtype-aware sublane multiple
    block_budget = _block_budget_bytes()

    # ---- lane (column) tile: prefer full width -> contiguous DMA, bias resident
    lane_budget = max(128, block_budget // (sub_mult * itemsize))
    if width <= lane_budget:
        tl = width
    else:
        tl = _largest_divisor_tile(width, (lane_budget // 128) * 128, 128)
        if tl is None:
            tl = max(128, (lane_budget // 128) * 128)   # ragged last column block
    cols_grid = pl.cdiv(width, tl)

    # ---- row tile (exact divisor preferred; capped ragged fallback otherwise)
    target_rows = max(sub_mult, (block_budget // (tl * itemsize)) // sub_mult * sub_mult)
    tr = _largest_divisor_tile(rows2, target_rows, sub_mult)
    if tr is None:
        tr = min(target_rows, _round_up(rows2, sub_mult))   # ragged last row block

    # Ensure >= 2 blocks when possible so v7x can shard over its 2 TensorCores.
    if cols_grid * pl.cdiv(rows2, tr) == 1 and rows2 >= 2 * sub_mult:
        half = _round_up((rows2 + 1) // 2, sub_mult)
        tr = _largest_divisor_tile(rows2, half, sub_mult) or half
    rows_grid = pl.cdiv(rows2, tr)

    # Explicit scoped-VMEM limit sized from the actual tiles (double-buffered
    # x + out + bias), with headroom; always below v7x's 64 MiB physical VMEM.
    vmem_need = 2 * 2 * tr * tl * itemsize + 2 * width * itemsize
    vmem_limit = int(min(max(vmem_need + (4 << 20), 16 << 20), 48 << 20))

    total = rows2 * width

    out2d = pl.pallas_call(
        _bias_add_kernel,
        out_shape=jax.ShapeDtypeStruct((rows2, width), x.dtype),
        # Column (bias-varying) axis OUTERMOST, rows innermost (fastest):
        # the bias block index is constant across the inner row sweep, so it is
        # fetched only cols_grid times (once, in the common tl == width case).
        grid=(cols_grid, rows_grid),
        in_specs=[
            pl.BlockSpec((tr, tl), lambda j, i: (i, j)),
            pl.BlockSpec((1, tl), lambda j, i: (0, j)),
        ],
        out_specs=pl.BlockSpec((tr, tl), lambda j, i: (i, j)),
        compiler_params=pltpu.CompilerParams(
            # Independent blocks -> megacore/v7x shards the grid over its cores.
            dimension_semantics=("parallel", "parallel"),
            vmem_limit_bytes=vmem_limit,
        ),
        cost_estimate=pl.CostEstimate(
            flops=total,
            transcendentals=0,
            bytes_accessed=2 * total * itemsize + length * itemsize,
        ),
    )(x2d, bias_row)

    return out2d.reshape(orig_shape)


if __name__ == "__main__":
    key = jax.random.PRNGKey(0)
    k_x, k_b, k_x2, k_b2 = jax.random.split(key, 4)

    # BiasLayer(length=hidden): x (batch, seq, hidden) + bias (hidden,)
    batch, seq, hidden = 2, 8, 32
    x = jax.random.normal(k_x, (batch, seq, hidden), dtype=jnp.float32)
    bias = jax.random.normal(k_b, (hidden,), dtype=jnp.float32)  # ~ t.randn(length)

    # Force the Pallas path (the auto path short-circuits tiny inputs).
    out = bias_layer(x, bias, min_bytes_for_pallas=0)
    jax.block_until_ready(out)
    assert out.shape == x.shape
    assert jnp.allclose(out, x + bias, atol=1e-6), "f32 mismatch vs reference"

    # Default (auto) path on the same tiny input -> plain-JAX fast path.
    out_fast = bias_layer(x, bias)
    assert jnp.allclose(out_fast, x + bias, atol=1e-6), "fast-path mismatch"

    # bf16 case exercising dtype-aware sublane tiling and the >=2-block split.
    x2 = jax.random.normal(k_x2, (4, 16, 128), dtype=jnp.bfloat16)
    b2 = jax.random.normal(k_b2, (128,), dtype=jnp.bfloat16)
    out2 = bias_layer(x2, b2, min_bytes_for_pallas=0)
    jax.block_until_ready(out2)
    assert jnp.allclose(out2.astype(jnp.float32), (x2 + b2).astype(jnp.float32),
                        atol=1e-2, rtol=1e-2), "bf16 mismatch vs reference"

    print("KERNEL_OK")
</pallas_src>

<mosaic_0001>
module attributes {stable_mosaic.version = 11 : i64} {
  func.func @_bias_add_kernel(%arg0: i32, %arg1: i32, %arg2: memref<4x128xf32, #tpu.memory_space<vmem>>, %arg3: memref<1x128xf32, #tpu.memory_space<vmem>>, %arg4: memref<4x128xf32, #tpu.memory_space<vmem>>) attributes {dimension_semantics = [#tpu.dimension_semantics<parallel>, #tpu.dimension_semantics<parallel>], iteration_bounds = array<i64: 1, 1>, scalar_prefetch = 0 : i64, scratch_operands = 0 : i64, tpu.core_type = #tpu.core_type<tc>, window_params = [{transform_indices = @transform_0, window_bounds = array<i64: 4, 128>}, {transform_indices = @transform_1, window_bounds = array<i64: 1, 128>}, {transform_indices = @transform_2, window_bounds = array<i64: 4, 128>}]} {
    %c0 = arith.constant 0 : index
    %c0_0 = arith.constant 0 : index
    %0 = vector.load %arg2[%c0, %c0_0] : memref<4x128xf32, #tpu.memory_space<vmem>>, vector<4x128xf32>
    %c0_1 = arith.constant 0 : index
    %c0_2 = arith.constant 0 : index
    %1 = vector.load %arg3[%c0_1, %c0_2] : memref<1x128xf32, #tpu.memory_space<vmem>>, vector<1x128xf32>
    %2 = vector.broadcast %1 : vector<1x128xf32> to vector<4x128xf32>
    %3 = arith.addf %0, %2 : vector<4x128xf32>
    %c0_3 = arith.constant 0 : index
    %c0_4 = arith.constant 0 : index
    %4 = vector.load %arg4[%c0_3, %c0_4] : memref<4x128xf32, #tpu.memory_space<vmem>>, vector<4x128xf32>
    tpu.vector_store %arg4[%c0_3, %c0_4], %3 {strides = array<i32>} : memref<4x128xf32, #tpu.memory_space<vmem>>, vector<4x128xf32>,
    return
  }
  func.func @transform_0(%arg0: i32, %arg1: i32) -> (i32, i32) {
    %c0_i32 = arith.constant 0 : i32
    return %arg1, %arg0 : i32, i32
  }
  func.func @transform_1(%arg0: i32, %arg1: i32) -> (i32, i32) {
    %c0_i32 = arith.constant 0 : i32
    %c0_i32_0 = arith.constant 0 : i32
    return %c0_i32, %arg0 : i32, i32
  }
  func.func @transform_2(%arg0: i32, %arg1: i32) -> (i32, i32) {
    %c0_i32 = arith.constant 0 : i32
    return %arg1, %arg0 : i32, i32
  }
}

</mosaic_0001>

<llo_original>
// kernel: tpu_custom_call.1
$region0: #{tpu_custom_call.1}
  #allocation0 [shape = 'u32[]', space=smem, size = 0x4, offset = 0x4, fixed_abs, tag = 'smem constant byte address 0x4 - core index']
  #allocation1 [shape = 'u32[144,128]{1,0:T(1,128)}', space=vmem, size = 0x12000, scoped, tag = 'internal scratch']
  %s0 = inlined_call_operand.hbm [shape: f32[4,128], index: 0, kind: input, shape index: {}]
  %s1 = inlined_call_operand.vmem [shape: f32[1,128], index: 1, kind: input, shape index: {}]
  %s2 = inlined_call_operand.hbm [shape: f32[4,128], index: 2, kind: output, shape index: {}]
  %s3 = sld [smem:[#allocation0]]
  $region22: #{tpu_custom_call.1} parent=0
    _
  %s5 = ssub.s32 1, %s3
  %s6 = scalar_select 0, %s5, %s3
  $region1: #{tpu_custom_call.1} parent=0
    #allocation2 [shape = 'u8[2048]{0}', space=vmem, size = 0x800, scoped, tag = 'input window, operand 0, single buffered']
    #allocation3 [shape = 's32[1]{0}', space=sflag, size = 0x4, scoped, tag = 'scoped memory for tpu_custom_call.1']
    #allocation4 [shape = 's32[1]{0}', space=sflag, size = 0x4, scoped, tag = 'scoped memory for tpu_custom_call.1']
    #allocation5 [shape = 'u8[2048]{0}', space=vmem, size = 0x800, scoped, tag = 'output window, operand 0, single buffered']
    %7 = vsyncpa [#allocation3], 0
    %8 = vsyncpa [#allocation4], 0
    // Predicated region
    $region2: #{tpu_custom_call.1} parent=1 // pred_check
      _
    $region3: #{tpu_custom_call.1} parent=1 // pred_check_branch
      %10 = sbr.rel (0) target = $region5
    $region4: #{tpu_custom_call.1} parent=1 // pred_region
      %s12 = ssub.s32 64, 64
      %13 = vsyncadd [#allocation3], %s12
      %s15 = sshll.u32 [#allocation2], 4
      %s16 = int_to_ptr.vmem [resolvable:$true] %s15
      %18 = dma.hbm_to_vmem [thread:$0]  %s0, 64, %s16, [#allocation3]
    $region5: #{tpu_custom_call.1} parent=1 // pred_fallthru
      _
    // Predicated region
    $region6: #{tpu_custom_call.1} parent=1 // pred_check
      _
    $region7: #{tpu_custom_call.1} parent=1 // pred_check_branch
      %20 = sbr.rel (0) target = $region9
    $region8: #{tpu_custom_call.1} parent=1 // pred_region
      _
    $region9: #{tpu_custom_call.1} parent=1 // pred_fallthru
      _
    // Predicated region
    $region10: #{tpu_custom_call.1} parent=1 // pred_check
      _
    $region11: #{tpu_custom_call.1} parent=1 // pred_check_branch
      %22 = sbr.rel (0) target = $region13
    $region12: #{tpu_custom_call.1} parent=1 // pred_region
      %23 = dma.done [#allocation3], 64
    $region13: #{tpu_custom_call.1} parent=1 // pred_fallthru
      _
    %v24 = vld [vmem:[#allocation2] sm:$0xf]
    %v25 = vld [vmem:[%s1] sm:$0x1]
    %v27 = vlaneseq
    %v28 = vshrl.u32 %v27, 7
    %v29 = vsub.s32 0, %v28
    %v30 = vrot.slane %v25, %v29
    %v32 = vadd.f32 %v24, %v30
    %33 = vst [vmem:[#allocation5] sm:$0xf] %v32
    // Predicated region
    $region14: #{tpu_custom_call.1} parent=1 // pred_check
      _
    $region15: #{tpu_custom_call.1} parent=1 // pred_check_branch
      %35 = sbr.rel (0) target = $region17
    $region16: #{tpu_custom_call.1} parent=1 // pred_region
      %s37 = ssub.s32 64, 64
      %38 = vsyncadd [#allocation4], %s37
      %s40 = sshll.u32 [#allocation5], 4
      %s41 = int_to_ptr.vmem [resolvable:$true] %s40
      %43 = dma.vmem_to_hbm [thread:$0]  %s41, 64, %s2, [#allocation4]
    $region17: #{tpu_custom_call.1} parent=1 // pred_fallthru
      _
    // Predicated region
    $region18: #{tpu_custom_call.1} parent=1 // pred_check
      _
    $region19: #{tpu_custom_call.1} parent=1 // pred_check_branch
      %45 = sbr.rel (0) target = $region21
    $region20: #{tpu_custom_call.1} parent=1 // pred_region
      %46 = dma.done [#allocation4], 64
    $region21: #{tpu_custom_call.1} parent=1 // pred_fallthru
      _
    %47 = vsyncpa [#allocation3], 1
    %48 = vsyncpa [#allocation4], 1

</llo_original>
